<compile_context>
chip_gen: v6e
topology: v6e:2x2x1
jax: 0.10.0
libtpu: 0.0.40
codegen_flags: <defaults>
</compile_context>

<pallas_src>
import functools
import math

import jax
import jax.numpy as jnp
from jax.experimental import pallas as pl
from jax.experimental.pallas import tpu as pltpu


_DMA_SLOTS = 4                       # outstanding HBM->HBM DMAs (review: 2-4)
_DMA_CHUNK_BYTES = 8 * 1024 * 1024   # ~8 MiB contiguous per DMA
_SMALL_BYPASS_BYTES = 2 * 1024 * 1024  # below this, a plain XLA copy wins


def _dma_copy_kernel(x_hbm, o_hbm, sems, *, chunk_rows, n_full, rem):
    """Chunked HBM->HBM copy: up to _DMA_SLOTS outstanding DMAs, no VMEM."""

    def full_chunk(start, slot):
        # Only the semaphore + transfer size matter for .wait(), so waits may
        # reuse a canonical (start=0) descriptor of the same chunk size.
        return pltpu.make_async_copy(
            x_hbm.at[pl.ds(start, chunk_rows)],
            o_hbm.at[pl.ds(start, chunk_rows)],
            sems.at[slot],
        )

    if n_full > 0:
        @pl.loop(0, n_full)
        def _(i):
            slot = i % _DMA_SLOTS

            @pl.when(i >= _DMA_SLOTS)
            def _():
                # Before reusing a slot, drain the DMA previously issued on it.
                full_chunk(0, slot).wait()

            full_chunk(i * chunk_rows, slot).start()

    if rem > 0:
        # Remainder rows get their own semaphore slot so they overlap with the
        # drain of the full-size chunks below.
        rem_copy = pltpu.make_async_copy(
            x_hbm.at[pl.ds(n_full * chunk_rows, rem)],
            o_hbm.at[pl.ds(n_full * chunk_rows, rem)],
            sems.at[_DMA_SLOTS],
        )
        rem_copy.start()

    # Drain the remaining outstanding full-size chunks (at most one per slot).
    for slot in range(min(n_full, _DMA_SLOTS)):
        full_chunk(0, slot).wait()

    if rem > 0:
        rem_copy.wait()


def _chunked_hbm_copy(x, chunk_bytes=_DMA_CHUNK_BYTES):
    """HBM->HBM copy of `x`, chunked along axis 0 in ~chunk_bytes slabs."""
    rows = x.shape[0]
    itemsize = jnp.dtype(x.dtype).itemsize
    row_bytes = itemsize * math.prod(x.shape[1:])  # math.prod(()) == 1

    chunk_rows = max(1, chunk_bytes // row_bytes)
    chunk_rows = min(chunk_rows, rows)
    n_full = rows // chunk_rows
    rem = rows - n_full * chunk_rows

    kernel = functools.partial(
        _dma_copy_kernel, chunk_rows=chunk_rows, n_full=n_full, rem=rem
    )
    return pl.pallas_call(
        kernel,
        out_shape=jax.ShapeDtypeStruct(x.shape, x.dtype),
        in_specs=[pl.BlockSpec(memory_space=pl.ANY)],
        out_specs=pl.BlockSpec(memory_space=pl.ANY),
        scratch_shapes=[pltpu.SemaphoreType.DMA((_DMA_SLOTS + 1,))],
        cost_estimate=pl.CostEstimate(
            flops=0, transcendentals=0, bytes_accessed=2 * rows * row_bytes
        ),
    )(x)


def _lane_dense_layout(n_elems):
    """Widest lane count (multiple of 128) dividing n, preferring rows >= 8."""
    fallback = None
    for lanes in (4096, 2048, 1024, 512, 256, 128):
        if n_elems % lanes == 0:
            rows = n_elems // lanes
            if rows >= 8:
                return rows, lanes
            if fallback is None:
                fallback = (rows, lanes)
    return fallback  # None if n_elems is not a multiple of 128


def _materialized_copy(x, force_pallas=False, chunk_bytes=_DMA_CHUNK_BYTES):
    nbytes = x.size * jnp.dtype(x.dtype).itemsize
    if x.ndim == 0 or x.size == 0 or (nbytes < _SMALL_BYPASS_BYTES and not force_pallas):
        # Pallas launch/grid setup would dominate for tiny tensors.
        return jnp.copy(x)

    layout = _lane_dense_layout(x.size) if x.size % 128 == 0 else None
    if layout is not None:
        rows, lanes = layout
        # Contiguous reshape: metadata only, no data movement.
        y = _chunked_hbm_copy(x.reshape(rows, lanes), chunk_bytes)
        return y.reshape(x.shape)

    # Element count not a multiple of 128: chunk along the leading axis with
    # the full trailing dims per chunk (no whole-array block, no VMEM).
    return _chunked_hbm_copy(x, chunk_bytes)


def surprise_and_forget(x, threshold=0.5, materialize=False):
    """Pallas implementation of SurpriseAndForget.forward (identity).

    `threshold` is accepted for API parity with the PyTorch module but, just
    like in the reference forward, it does not affect the output.

    Default path returns `x` directly (zero HBM traffic — the forward is an
    identity). Set `materialize=True` to force a fresh buffer via the chunked
    HBM->HBM DMA copy kernel.
    """
    del threshold  # unused in forward, matching the reference module
    if not materialize:
        return x
    return _materialized_copy(x)


if __name__ == "__main__":
    key = jax.random.PRNGKey(0)
    k0, k1, k2 = jax.random.split(key, 3)

    # Module-consistent small input.
    batch, seq, embedding_dim = 2, 8, 32
    x = jax.random.normal(k0, (batch, seq, embedding_dim), dtype=jnp.float32)

    # 1) Default forward: identity (matches the PyTorch module exactly).
    y = jax.block_until_ready(surprise_and_forget(x, threshold=0.5))
    assert y.shape == x.shape and y.dtype == x.dtype
    assert bool(jnp.array_equal(y, x))

    # 2) Materialized path, tiny input -> plain XLA copy bypass.
    y_small = jax.block_until_ready(
        surprise_and_forget(x, threshold=0.5, materialize=True)
    )
    assert y_small.shape == x.shape and y_small.dtype == x.dtype
    assert bool(jnp.array_equal(y_small, x))

    # 3) Pallas chunked HBM->HBM DMA copy: lane-dense path, multiple chunks
    #    (small chunk_bytes so slot reuse + drain are exercised on a small
    #    8 MiB tensor).
    x_big = jax.random.normal(k1, (4, 512, 1024), dtype=jnp.float32)
    y_big = jax.block_until_ready(
        _materialized_copy(x_big, force_pallas=True, chunk_bytes=1 << 20)
    )
    assert y_big.shape == x_big.shape and y_big.dtype == x_big.dtype
    assert bool(jnp.array_equal(y_big, x_big))

    # 4) Non-multiple-of-128 fallback: leading-axis chunking with remainder.
    x_odd = jax.random.normal(k2, (13, 7, 50), dtype=jnp.float32)
    y_odd = jax.block_until_ready(
        _materialized_copy(x_odd, force_pallas=True, chunk_bytes=4096)
    )
    assert y_odd.shape == x_odd.shape and y_odd.dtype == x_odd.dtype
    assert bool(jnp.array_equal(y_odd, x_odd))

    print("KERNEL_OK")
</pallas_src>

<mosaic_0001>
module attributes {stable_mosaic.version = 11 : i64} {
  func.func @_dma_copy_kernel(%arg0: memref<512x4096xf32, #tpu.memory_space<any>>, %arg1: memref<512x4096xf32, #tpu.memory_space<any>>, %arg2: memref<5x!tpu.dma_semaphore, #tpu.memory_space<semaphore_mem>>) attributes {dimension_semantics = [], scalar_prefetch = 0 : i64, scratch_operands = 1 : i64, tpu.core_type = #tpu.core_type<tc>} {
    %c0_i32 = arith.constant 0 : i32
    %c8_i32 = arith.constant 8 : i32
    %0 = arith.addi %c0_i32, %c8_i32 : i32
    %c1_i32 = arith.constant 1 : i32
    scf.for %arg3 = %c0_i32 to %0 step %c1_i32  : i32 {
      %c1_i32_19 = arith.constant 1 : i32
      %17 = arith.muli %arg3, %c1_i32_19 : i32
      %c0_i32_20 = arith.constant 0 : i32
      %18 = arith.addi %c0_i32_20, %17 : i32
      %c4_i32 = arith.constant 4 : i32
      %c0_i32_21 = arith.constant 0 : i32
      %19 = arith.cmpi eq, %c4_i32, %c0_i32_21 : i32
      %c1_i32_22 = arith.constant 1 : i32
      %20 = arith.select %19, %c1_i32_22, %c4_i32 : i32
      %21 = arith.remsi %18, %20 : i32
      %c0_i32_23 = arith.constant 0 : i32
      %22 = arith.cmpi ne, %21, %c0_i32_23 : i32
      %c0_i32_24 = arith.constant 0 : i32
      %23 = arith.cmpi slt, %21, %c0_i32_24 : i32
      %c0_i32_25 = arith.constant 0 : i32
      %24 = arith.cmpi slt, %20, %c0_i32_25 : i32
      %25 = arith.xori %23, %24 : i1
      %26 = arith.andi %25, %22 : i1
      %27 = arith.addi %21, %20 : i32
      %28 = arith.select %26, %27, %21 : i32
      %c4_i32_26 = arith.constant 4 : i32
      %29 = arith.cmpi sge, %18, %c4_i32_26 : i32
      %30 = arith.extui %29 : i1 to i32
      %c0_i32_27 = arith.constant 0 : i32
      %31 = arith.cmpi ne, %30, %c0_i32_27 : i32
      scf.if %31 {
        %c0_i32_30 = arith.constant 0 : i32
        %c0_i32_31 = arith.constant 0 : i32
        %37 = tpu.memref_slice %arg0[%c0_i32_30, %c0_i32_31] : memref<512x4096xf32, #tpu.memory_space<any>> -> memref<64x4096xf32, #tpu.memory_space<any>>
        %c0_i32_32 = arith.constant 0 : i32
        %c0_i32_33 = arith.constant 0 : i32
        %38 = tpu.memref_slice %arg1[%c0_i32_32, %c0_i32_33] : memref<512x4096xf32, #tpu.memory_space<any>> -> memref<64x4096xf32, #tpu.memory_space<any>>
        %39 = tpu.memref_slice %arg2[%28] : memref<5x!tpu.dma_semaphore, #tpu.memory_space<semaphore_mem>> -> memref<1x!tpu.dma_semaphore, #tpu.memory_space<semaphore_mem>>
        %40 = tpu.memref_squeeze %39 : memref<1x!tpu.dma_semaphore, #tpu.memory_space<semaphore_mem>> -> memref<!tpu.dma_semaphore, #tpu.memory_space<semaphore_mem>>
        tpu.wait_dma2 semaphore(%40 : memref<!tpu.dma_semaphore, #tpu.memory_space<semaphore_mem>>) src(%37 : memref<64x4096xf32, #tpu.memory_space<any>>) dst(%38 : memref<64x4096xf32, #tpu.memory_space<any>>)
      } else {
      }
      %c64_i32 = arith.constant 64 : i32
      %32 = arith.muli %18, %c64_i32 : i32
      %c0_i32_28 = arith.constant 0 : i32
      %33 = tpu.memref_slice %arg0[%32, %c0_i32_28] : memref<512x4096xf32, #tpu.memory_space<any>> -> memref<64x4096xf32, #tpu.memory_space<any>>
      %c0_i32_29 = arith.constant 0 : i32
      %34 = tpu.memref_slice %arg1[%32, %c0_i32_29] : memref<512x4096xf32, #tpu.memory_space<any>> -> memref<64x4096xf32, #tpu.memory_space<any>>
      %35 = tpu.memref_slice %arg2[%28] : memref<5x!tpu.dma_semaphore, #tpu.memory_space<semaphore_mem>> -> memref<1x!tpu.dma_semaphore, #tpu.memory_space<semaphore_mem>>
      %36 = tpu.memref_squeeze %35 : memref<1x!tpu.dma_semaphore, #tpu.memory_space<semaphore_mem>> -> memref<!tpu.dma_semaphore, #tpu.memory_space<semaphore_mem>>
      tpu.enqueue_dma source(%33 : memref<64x4096xf32, #tpu.memory_space<any>>) target(%34 : memref<64x4096xf32, #tpu.memory_space<any>>) target_semaphore(%36 : memref<!tpu.dma_semaphore, #tpu.memory_space<semaphore_mem>>)
    }
    %c8_i32_0 = arith.constant 8 : i32
    %c0_i32_1 = arith.constant 0 : i32
    %c0_i32_2 = arith.constant 0 : i32
    %c0_i32_3 = arith.constant 0 : i32
    %1 = tpu.memref_slice %arg0[%c0_i32_2, %c0_i32_3] : memref<512x4096xf32, #tpu.memory_space<any>> -> memref<64x4096xf32, #tpu.memory_space<any>>
    %c0_i32_4 = arith.constant 0 : i32
    %c0_i32_5 = arith.constant 0 : i32
    %2 = tpu.memref_slice %arg1[%c0_i32_4, %c0_i32_5] : memref<512x4096xf32, #tpu.memory_space<any>> -> memref<64x4096xf32, #tpu.memory_space<any>>
    %3 = tpu.memref_slice %arg2[%c0_i32_1] : memref<5x!tpu.dma_semaphore, #tpu.memory_space<semaphore_mem>> -> memref<1x!tpu.dma_semaphore, #tpu.memory_space<semaphore_mem>>
    %4 = tpu.memref_squeeze %3 : memref<1x!tpu.dma_semaphore, #tpu.memory_space<semaphore_mem>> -> memref<!tpu.dma_semaphore, #tpu.memory_space<semaphore_mem>>
    tpu.wait_dma2 semaphore(%4 : memref<!tpu.dma_semaphore, #tpu.memory_space<semaphore_mem>>) src(%1 : memref<64x4096xf32, #tpu.memory_space<any>>) dst(%2 : memref<64x4096xf32, #tpu.memory_space<any>>)
    %c1_i32_6 = arith.constant 1 : i32
    %c0_i32_7 = arith.constant 0 : i32
    %c0_i32_8 = arith.constant 0 : i32
    %5 = tpu.memref_slice %arg0[%c0_i32_7, %c0_i32_8] : memref<512x4096xf32, #tpu.memory_space<any>> -> memref<64x4096xf32, #tpu.memory_space<any>>
    %c0_i32_9 = arith.constant 0 : i32
    %c0_i32_10 = arith.constant 0 : i32
    %6 = tpu.memref_slice %arg1[%c0_i32_9, %c0_i32_10] : memref<512x4096xf32, #tpu.memory_space<any>> -> memref<64x4096xf32, #tpu.memory_space<any>>
    %7 = tpu.memref_slice %arg2[%c1_i32_6] : memref<5x!tpu.dma_semaphore, #tpu.memory_space<semaphore_mem>> -> memref<1x!tpu.dma_semaphore, #tpu.memory_space<semaphore_mem>>
    %8 = tpu.memref_squeeze %7 : memref<1x!tpu.dma_semaphore, #tpu.memory_space<semaphore_mem>> -> memref<!tpu.dma_semaphore, #tpu.memory_space<semaphore_mem>>
    tpu.wait_dma2 semaphore(%8 : memref<!tpu.dma_semaphore, #tpu.memory_space<semaphore_mem>>) src(%5 : memref<64x4096xf32, #tpu.memory_space<any>>) dst(%6 : memref<64x4096xf32, #tpu.memory_space<any>>)
    %c2_i32 = arith.constant 2 : i32
    %c0_i32_11 = arith.constant 0 : i32
    %c0_i32_12 = arith.constant 0 : i32
    %9 = tpu.memref_slice %arg0[%c0_i32_11, %c0_i32_12] : memref<512x4096xf32, #tpu.memory_space<any>> -> memref<64x4096xf32, #tpu.memory_space<any>>
    %c0_i32_13 = arith.constant 0 : i32
    %c0_i32_14 = arith.constant 0 : i32
    %10 = tpu.memref_slice %arg1[%c0_i32_13, %c0_i32_14] : memref<512x4096xf32, #tpu.memory_space<any>> -> memref<64x4096xf32, #tpu.memory_space<any>>
    %11 = tpu.memref_slice %arg2[%c2_i32] : memref<5x!tpu.dma_semaphore, #tpu.memory_space<semaphore_mem>> -> memref<1x!tpu.dma_semaphore, #tpu.memory_space<semaphore_mem>>
    %12 = tpu.memref_squeeze %11 : memref<1x!tpu.dma_semaphore, #tpu.memory_space<semaphore_mem>> -> memref<!tpu.dma_semaphore, #tpu.memory_space<semaphore_mem>>
    tpu.wait_dma2 semaphore(%12 : memref<!tpu.dma_semaphore, #tpu.memory_space<semaphore_mem>>) src(%9 : memref<64x4096xf32, #tpu.memory_space<any>>) dst(%10 : memref<64x4096xf32, #tpu.memory_space<any>>)
    %c3_i32 = arith.constant 3 : i32
    %c0_i32_15 = arith.constant 0 : i32
    %c0_i32_16 = arith.constant 0 : i32
    %13 = tpu.memref_slice %arg0[%c0_i32_15, %c0_i32_16] : memref<512x4096xf32, #tpu.memory_space<any>> -> memref<64x4096xf32, #tpu.memory_space<any>>
    %c0_i32_17 = arith.constant 0 : i32
    %c0_i32_18 = arith.constant 0 : i32
    %14 = tpu.memref_slice %arg1[%c0_i32_17, %c0_i32_18] : memref<512x4096xf32, #tpu.memory_space<any>> -> memref<64x4096xf32, #tpu.memory_space<any>>
    %15 = tpu.memref_slice %arg2[%c3_i32] : memref<5x!tpu.dma_semaphore, #tpu.memory_space<semaphore_mem>> -> memref<1x!tpu.dma_semaphore, #tpu.memory_space<semaphore_mem>>
    %16 = tpu.memref_squeeze %15 : memref<1x!tpu.dma_semaphore, #tpu.memory_space<semaphore_mem>> -> memref<!tpu.dma_semaphore, #tpu.memory_space<semaphore_mem>>
    tpu.wait_dma2 semaphore(%16 : memref<!tpu.dma_semaphore, #tpu.memory_space<semaphore_mem>>) src(%13 : memref<64x4096xf32, #tpu.memory_space<any>>) dst(%14 : memref<64x4096xf32, #tpu.memory_space<any>>)
    return
  }
}

</mosaic_0001>

<llo_original>
// kernel: tpu_custom_call.1
$region0: #{tpu_custom_call.1}
  #allocation0 [shape = 'u32[]', space=smem, size = 0x4, offset = 0x4, fixed_abs, tag = 'smem constant byte address 0x4 - core index']
  #allocation1 [shape = 'u32[144,128]{1,0:T(1,128)}', space=vmem, size = 0x12000, scoped, tag = 'internal scratch']
  #allocation2 [shape = 's32[5]{0}', space=sflag, size = 0x14, scoped, tag = 'scratch operand']
  #allocation3 [shape = 's32[]', space=sflag, size = 0x4, offset = 0, fixed_abs, tag = 'sflag constant byte address 0x0 - dummy sync flag']
  #allocation4 [shape = 'u32[0]{0}', space=smem, size = 0, offset = 0, fixed_abs, tag = 'smem constant byte address 0x0 - null']
  %s0 = inlined_call_operand.hbm [shape: f32[512,4096], index: 0, kind: input, shape index: {}]
  %s1 = inlined_call_operand.hbm [shape: f32[512,4096], index: 1, kind: output, shape index: {}]
  %s2 = sld [smem:[#allocation0]]
  $region13: #{tpu_custom_call.1} parent=0
    _
  %s4 = ssub.s32 1, %s2
  %s5 = scalar_select 0, %s4, %s2
  loop: start=0, step=1, limit=8
  $region2: #{tpu_custom_call.1} parent=0 // loop_pre_header
    _
  $region3: #{tpu_custom_call.1} parent=0 // loop_header
    %s7 = sphi 0, %s11
    %p8 = scmp.ge.s32.totalorder %s7, 8
  $region4: #{tpu_custom_call.1} parent=0 // loop_header_branch
    %10 = sbr.rel (%p8) target = $region8
  $region5: #{tpu_custom_call.1} parent=0 // loop_body
    %p12 = scmp.lt.s32.totalorder %s7, 0
    %s13 = ssub.s32 0, %s7
    %s14 = scalar_select %p12, %s13, %s7
    %s15 = sand.u32 %s14, 3
    %s16 = ssub.s32 0, %s15
    %s17 = scalar_select %p12, %s16, %s15
    %p18 = scmp.ne.s32.totalorder %s17, 0
    %p19 = scmp.lt.s32.totalorder %s17, 0
    %p20 = pnand %p19, %p18
    %p21 = pneg %p20
    %s22 = sadd.s32 %s17, 4
    %s23 = scalar_select %p21, %s22, %s17
    %p24 = scmp.ge.s32.totalorder %s7, 4
    // Predicated region
    $region9: #{tpu_custom_call.1} parent=5 // pred_check
      %p25 = pneg %p24
    $region10: #{tpu_custom_call.1} parent=5 // pred_check_branch
      %27 = sbr.rel (%p25) target = $region12
    $region11: #{tpu_custom_call.1} parent=5 // pred_region
      %s28 = scalar_lea.sflag [#allocation2], %s23
      %s29 = smul.u32 8, 8
      %s30 = smul.u32 %s29, 32
      %s31 = sshll.u32 %s30, 4
      %32 = dma.done %s28, %s31
    $region12: #{tpu_custom_call.1} parent=5 // pred_fallthru
      _
    %s33 = smul.u32 %s7, 64
    %s34 = sshra.s32 %s33, 3
    %s35 = sand.u32 %s33, 7
    %s36 = smul.u32 %s34, 32
    %s37 = smul.addr %s36, 128
    %s38 = scalar_lea.hbm %s0, %s37
    %s39 = smul.addr %s36, 128
    %s40 = scalar_lea.hbm %s1, %s39
    %s41 = scalar_lea.sflag [#allocation2], %s23
    %s43 = sshll.u32 1, 14
    %s44 = sxor.u32 4294967295, %s43
    %48 = dma.general %s38, 32768, %s40, %s41, 131072, [#allocation4], 0, 0
  $region6: #{tpu_custom_call.1} parent=0 // loop_footer
    %s11 = sadd.s32 1, %s7
  $region7: #{tpu_custom_call.1} parent=0 // loop_footer_branch
    %6 = sbr.rel target = $region3
  $region8: #{tpu_custom_call.1} parent=0 // loop_exit
    _
  %s49 = smul.u32 8, 8
  %s50 = smul.u32 %s49, 32
  %s51 = sshll.u32 %s50, 4
  %52 = dma.done [#allocation2], %s51
  %s53 = scalar_lea.sflag [#allocation2], 1
  %s54 = sshll.u32 %s50, 4
  %55 = dma.done %s53, %s54
  %s56 = scalar_lea.sflag [#allocation2], 2
  %s57 = sshll.u32 %s50, 4
  %58 = dma.done %s56, %s57
  %s59 = scalar_lea.sflag [#allocation2], 3
  %s60 = sshll.u32 %s50, 4
  %61 = dma.done %s59, %s60
  %62 = vsyncmov [#allocation2]
  %s63 = vpop.sfrf %62
  %p64 = scmp.eq.s32.totalorder %s63, 0
  %p65 = pneg %p64
  %67 = shalt.err (%p65)
  %s68 = scalar_lea.sflag [#allocation2], 1
  %69 = vsyncmov %s68
  %s70 = vpop.sfrf %69
  %p71 = scmp.eq.s32.totalorder %s70, 0
  %p72 = pneg %p71
  %74 = shalt.err (%p72)
  %s75 = scalar_lea.sflag [#allocation2], 2
  %76 = vsyncmov %s75
  %s77 = vpop.sfrf %76
  %p78 = scmp.eq.s32.totalorder %s77, 0
  %p79 = pneg %p78
  %81 = shalt.err (%p79)
  %s82 = scalar_lea.sflag [#allocation2], 3
  %83 = vsyncmov %s82
  %s84 = vpop.sfrf %83
  %p85 = scmp.eq.s32.totalorder %s84, 0
  %p86 = pneg %p85
  %88 = shalt.err (%p86)
  %s89 = scalar_lea.sflag [#allocation2], 4
  %90 = vsyncmov %s89
  %s91 = vpop.sfrf %90
  %p92 = scmp.eq.s32.totalorder %s91, 0
  %p93 = pneg %p92
  %95 = shalt.err (%p93)

</llo_original>
